<compile_context>
chip_gen: v7x
topology: tpu7x:2x2x1
jax: 0.10.0
libtpu: 0.0.40
codegen_flags: <defaults>
</compile_context>

<pallas_src>
import jax
import jax.numpy as jnp
from jax import lax
from jax.experimental import pallas as pl
from jax.experimental.pallas import tpu as pltpu


# ---------------------------------------------------------------------------
# Kernel 1: global sum / sum-of-squares reduction (for torch.std, unbiased)
# ---------------------------------------------------------------------------
def _stats_kernel(x_ref, sum_ref, sumsq_ref, s_acc, sq_acc):
    i = pl.program_id(0)

    @pl.when(i == 0)
    def _():
        s_acc[...] = jnp.zeros_like(s_acc)
        sq_acc[...] = jnp.zeros_like(sq_acc)

    x = x_ref[...].astype(jnp.float32)                   # (BR, LANES), BR % 8 == 0
    xr = x.reshape(-1, 8, x.shape[-1])                   # free regrouping of rows
    s_acc[...] += jnp.sum(xr, axis=0)                    # pure VPU vreg adds
    sq_acc[...] += jnp.sum(xr * xr, axis=0)

    @pl.when(i == pl.num_programs(0) - 1)
    def _():
        # Single cross-lane reduction + scalar store, once per kernel.
        sum_ref[0, 0] = jnp.sum(s_acc[...])
        sumsq_ref[0, 0] = jnp.sum(sq_acc[...])


# ---------------------------------------------------------------------------
# Kernel 2: Box-Muller Gaussian noise (both outputs) + add
# ---------------------------------------------------------------------------
def _add_noise_kernel(scale_ref, x_ref, bits_ref, o_ref):
    half = x_ref.shape[0] // 2
    scale = scale_ref[0, 0]

    b1 = bits_ref[:half, :]
    b2 = bits_ref[half:, :]

    # Raw bits -> float32 in [1, 2) via the exponent trick (no int->fp convert).
    f1 = lax.bitcast_convert_type((b1 >> 9) | jnp.uint32(0x3F800000), jnp.float32)
    f2 = lax.bitcast_convert_type((b2 >> 9) | jnp.uint32(0x3F800000), jnp.float32)
    u1 = 2.0 - f1            # (0, 1]  -> log() is safe
    u2 = f2 - 1.0            # [0, 1)

    # Box-Muller: one pair of uniforms -> two independent standard normals.
    r = jnp.sqrt(-2.0 * jnp.log(u1))
    theta = (2.0 * jnp.pi) * u2
    z1 = r * jnp.cos(theta)
    z2 = r * jnp.sin(theta)

    x = x_ref[...].astype(jnp.float32)
    o_ref[:half, :] = (x[:half, :] + z1 * scale).astype(o_ref.dtype)
    o_ref[half:, :] = (x[half:, :] + z2 * scale).astype(o_ref.dtype)


# ---------------------------------------------------------------------------
# Wrapper
# ---------------------------------------------------------------------------
def gaussian_noise(audio, key, min_snr=1e-4, max_snr=1e-2,
                   lanes=512, max_block_rows=256):
    orig_shape = audio.shape
    orig_dtype = audio.dtype
    n = audio.size

    # ---- layout: flatten + zero-pad into a lane-dense (rows_p, lanes) slab ----
    flat = audio.reshape(-1).astype(jnp.float32)
    rows = -(-n // lanes)                                    # cdiv
    if rows >= max_block_rows:
        br = max_block_rows                                  # 256x512 f32 = 512 KiB
    else:
        br = ((rows + 7) // 8) * 8                           # sublane-aligned
    rows_p = ((rows + br - 1) // br) * br
    total = rows_p * lanes
    if total > n:
        flat = jnp.concatenate([flat, jnp.zeros((total - n,), jnp.float32)])
    slab = flat.reshape(rows_p, lanes)
    grid = (rows_p // br,)

    # ---- pass 1: global sum / sumsq (zero padding contributes nothing) ----
    s, ss = pl.pallas_call(
        _stats_kernel,
        out_shape=(
            jax.ShapeDtypeStruct((1, 1), jnp.float32),
            jax.ShapeDtypeStruct((1, 1), jnp.float32),
        ),
        grid=grid,
        in_specs=[pl.BlockSpec((br, lanes), lambda i: (i, 0))],
        out_specs=(
            pl.BlockSpec(memory_space=pltpu.SMEM),
            pl.BlockSpec(memory_space=pltpu.SMEM),
        ),
        scratch_shapes=[
            pltpu.VMEM((8, lanes), jnp.float32),
            pltpu.VMEM((8, lanes), jnp.float32),
        ],
        compiler_params=pltpu.CompilerParams(
            dimension_semantics=("arbitrary",)),
    )(slab)

    nf = jnp.float32(n)
    var = (ss[0, 0] - s[0, 0] * s[0, 0] / nf) / (nf - 1.0)   # torch.std: unbiased
    std = jnp.sqrt(jnp.maximum(var, 0.0))

    # ---- scalar glue: noise_std = uniform(min_snr*std, max_snr*std) ----
    k_u, k_bits = jax.random.split(key)
    u = jax.random.uniform(k_u, (), dtype=jnp.float32)
    noise_std = (min_snr + u * (max_snr - min_snr)) * std
    scale = noise_std.reshape(1, 1).astype(jnp.float32)

    # Raw uniform bits (one uint32 per output element); in-kernel Box-Muller
    # turns each pair of uniforms into two normals.
    # TODO(synk): switch back to the in-kernel hardware PRNG
    # (pltpu.prng_seed/prng_random_bits) once an interpret lowering exists.
    bits = jax.random.bits(k_bits, (rows_p, lanes), dtype=jnp.uint32)

    # ---- pass 2: generate Gaussian noise in-kernel and add ----
    out_slab = pl.pallas_call(
        _add_noise_kernel,
        out_shape=jax.ShapeDtypeStruct((rows_p, lanes), jnp.float32),
        grid=grid,
        in_specs=[
            pl.BlockSpec(memory_space=pltpu.SMEM),           # noise_std (1,1) f32
            pl.BlockSpec((br, lanes), lambda i: (i, 0)),     # audio slab
            pl.BlockSpec((br, lanes), lambda i: (i, 0)),     # random bits
        ],
        out_specs=pl.BlockSpec((br, lanes), lambda i: (i, 0)),
        compiler_params=pltpu.CompilerParams(
            dimension_semantics=("parallel",)),
    )(scale, slab, bits)

    out = out_slab.reshape(-1)[:n].reshape(orig_shape).astype(orig_dtype)
    return out, std, noise_std


if __name__ == "__main__":
    key = jax.random.PRNGKey(0)
    k_audio, k_noise = jax.random.split(key)

    # Small waveform batch: (batch=2, time=2048)
    audio = 0.3 * jax.random.normal(k_audio, (2, 2048), dtype=jnp.float32)

    out, std, noise_std = gaussian_noise(audio, k_noise,
                                         min_snr=1e-4, max_snr=1e-2)
    out = jax.block_until_ready(out)

    # Sanity checks.
    assert out.shape == audio.shape and out.dtype == audio.dtype
    assert bool(jnp.all(jnp.isfinite(out)))

    ref_std = float(jnp.std(audio, ddof=1))
    assert abs(float(std) - ref_std) < 1e-3 * max(ref_std, 1e-6)

    err = out - audio
    err_std = float(jnp.std(err))
    assert err_std > 0.0
    # Added noise should have std close to noise_std (loose statistical bound).
    assert abs(err_std - float(noise_std)) < 0.5 * float(noise_std) + 1e-8

    print("KERNEL_OK")
</pallas_src>

<mosaic_0001>
module attributes {stable_mosaic.version = 11 : i64} {
  func.func @_stats_kernel(%arg0: i32, %arg1: memref<8x512xf32, #tpu.memory_space<vmem>>, %arg2: memref<1x1xf32, #tpu.memory_space<smem>>, %arg3: memref<1x1xf32, #tpu.memory_space<smem>>, %arg4: memref<8x512xf32, #tpu.memory_space<vmem>>, %arg5: memref<8x512xf32, #tpu.memory_space<vmem>>) attributes {dimension_semantics = [#tpu.dimension_semantics<arbitrary>], iteration_bounds = array<i64: 1>, scalar_prefetch = 0 : i64, scratch_operands = 2 : i64, tpu.core_type = #tpu.core_type<tc>, window_params = [{transform_indices = @transform_0, window_bounds = array<i64: 8, 512>}, {transform_indices = @transform_1, window_bounds = array<i64: 1, 1>}, {transform_indices = @transform_2, window_bounds = array<i64: 1, 1>}]} {
    %c0_i32 = arith.constant 0 : i32
    %0 = arith.cmpi eq, %arg0, %c0_i32 : i32
    %1 = arith.extui %0 : i1 to i32
    %c0_i32_0 = arith.constant 0 : i32
    %2 = arith.cmpi ne, %1, %c0_i32_0 : i32
    scf.if %2 {
      %cst_13 = arith.constant 0.000000e+00 : f32
      %17 = vector.broadcast %cst_13 : f32 to vector<8x512xf32>
      %c0_14 = arith.constant 0 : index
      %c0_15 = arith.constant 0 : index
      %18 = vector.load %arg4[%c0_14, %c0_15] : memref<8x512xf32, #tpu.memory_space<vmem>>, vector<8x512xf32>
      tpu.vector_store %arg4[%c0_14, %c0_15], %17 {strides = array<i32>} : memref<8x512xf32, #tpu.memory_space<vmem>>, vector<8x512xf32>,
      %cst_16 = arith.constant 0.000000e+00 : f32
      %19 = vector.broadcast %cst_16 : f32 to vector<8x512xf32>
      %c0_17 = arith.constant 0 : index
      %c0_18 = arith.constant 0 : index
      %20 = vector.load %arg5[%c0_17, %c0_18] : memref<8x512xf32, #tpu.memory_space<vmem>>, vector<8x512xf32>
      tpu.vector_store %arg5[%c0_17, %c0_18], %19 {strides = array<i32>} : memref<8x512xf32, #tpu.memory_space<vmem>>, vector<8x512xf32>,
    } else {
    }
    %c0 = arith.constant 0 : index
    %c0_1 = arith.constant 0 : index
    %3 = vector.load %arg1[%c0, %c0_1] : memref<8x512xf32, #tpu.memory_space<vmem>>, vector<8x512xf32>
    %4 = vector.shape_cast %3 : vector<8x512xf32> to vector<1x8x512xf32>
    %c0_2 = arith.constant 0 : index
    %c0_3 = arith.constant 0 : index
    %5 = vector.load %arg4[%c0_2, %c0_3] : memref<8x512xf32, #tpu.memory_space<vmem>>, vector<8x512xf32>
    %cst = arith.constant dense<0.000000e+00> : vector<8x512xf32>
    %6 = vector.multi_reduction <add>, %4, %cst [0] : vector<1x8x512xf32> to vector<8x512xf32>
    %7 = arith.addf %5, %6 : vector<8x512xf32>
    %c0_4 = arith.constant 0 : index
    %c0_5 = arith.constant 0 : index
    %8 = vector.load %arg4[%c0_4, %c0_5] : memref<8x512xf32, #tpu.memory_space<vmem>>, vector<8x512xf32>
    tpu.vector_store %arg4[%c0_4, %c0_5], %7 {strides = array<i32>} : memref<8x512xf32, #tpu.memory_space<vmem>>, vector<8x512xf32>,
    %c0_6 = arith.constant 0 : index
    %c0_7 = arith.constant 0 : index
    %9 = vector.load %arg5[%c0_6, %c0_7] : memref<8x512xf32, #tpu.memory_space<vmem>>, vector<8x512xf32>
    %10 = arith.mulf %4, %4 : vector<1x8x512xf32>
    %cst_8 = arith.constant dense<0.000000e+00> : vector<8x512xf32>
    %11 = vector.multi_reduction <add>, %10, %cst_8 [0] : vector<1x8x512xf32> to vector<8x512xf32>
    %12 = arith.addf %9, %11 : vector<8x512xf32>
    %c0_9 = arith.constant 0 : index
    %c0_10 = arith.constant 0 : index
    %13 = vector.load %arg5[%c0_9, %c0_10] : memref<8x512xf32, #tpu.memory_space<vmem>>, vector<8x512xf32>
    tpu.vector_store %arg5[%c0_9, %c0_10], %12 {strides = array<i32>} : memref<8x512xf32, #tpu.memory_space<vmem>>, vector<8x512xf32>,
    %c0_i32_11 = arith.constant 0 : i32
    %14 = arith.cmpi eq, %arg0, %c0_i32_11 : i32
    %15 = arith.extui %14 : i1 to i32
    %c0_i32_12 = arith.constant 0 : i32
    %16 = arith.cmpi ne, %15, %c0_i32_12 : i32
    scf.if %16 {
      %c0_13 = arith.constant 0 : index
      %c0_14 = arith.constant 0 : index
      %17 = vector.load %arg4[%c0_13, %c0_14] : memref<8x512xf32, #tpu.memory_space<vmem>>, vector<8x512xf32>
      %18 = vector.shape_cast %17 : vector<8x512xf32> to vector<1x8x512xf32>
      %cst_15 = arith.constant dense<0.000000e+00> : vector<1xf32>
      %19 = vector.multi_reduction <add>, %18, %cst_15 [1, 2] : vector<1x8x512xf32> to vector<1xf32>
      %20 = vector.shape_cast %19 : vector<1xf32> to vector<1x1x1xf32>
      %21 = vector.extract %20[0, 0, 0] : f32 from vector<1x1x1xf32>
      %c0_16 = arith.constant 0 : index
      %c0_17 = arith.constant 0 : index
      %22 = memref.load %arg2[%c0_16, %c0_17] : memref<1x1xf32, #tpu.memory_space<smem>>
      memref.store %21, %arg2[%c0_16, %c0_17] : memref<1x1xf32, #tpu.memory_space<smem>>
      %c0_18 = arith.constant 0 : index
      %c0_19 = arith.constant 0 : index
      %23 = vector.load %arg5[%c0_18, %c0_19] : memref<8x512xf32, #tpu.memory_space<vmem>>, vector<8x512xf32>
      %24 = vector.shape_cast %23 : vector<8x512xf32> to vector<1x8x512xf32>
      %cst_20 = arith.constant dense<0.000000e+00> : vector<1xf32>
      %25 = vector.multi_reduction <add>, %24, %cst_20 [1, 2] : vector<1x8x512xf32> to vector<1xf32>
      %26 = vector.shape_cast %25 : vector<1xf32> to vector<1x1x1xf32>
      %27 = vector.extract %26[0, 0, 0] : f32 from vector<1x1x1xf32>
      %c0_21 = arith.constant 0 : index
      %c0_22 = arith.constant 0 : index
      %28 = memref.load %arg3[%c0_21, %c0_22] : memref<1x1xf32, #tpu.memory_space<smem>>
      memref.store %27, %arg3[%c0_21, %c0_22] : memref<1x1xf32, #tpu.memory_space<smem>>
    } else {
    }
    return
  }
  func.func @transform_0(%arg0: i32) -> (i32, i32) {
    %c0_i32 = arith.constant 0 : i32
    %c0_i32_0 = arith.constant 0 : i32
    return %arg0, %c0_i32 : i32, i32
  }
  func.func @transform_1(%arg0: i32) -> (i32, i32) {
    %c0_i32 = arith.constant 0 : i32
    %c0_i32_0 = arith.constant 0 : i32
    %c0_i32_1 = arith.constant 0 : i32
    return %c0_i32, %c0_i32_0 : i32, i32
  }
  func.func @transform_2(%arg0: i32) -> (i32, i32) {
    %c0_i32 = arith.constant 0 : i32
    %c0_i32_0 = arith.constant 0 : i32
    %c0_i32_1 = arith.constant 0 : i32
    return %c0_i32, %c0_i32_0 : i32, i32
  }
}

</mosaic_0001>

<llo_original>
// kernel: tpu_custom_call.1
$region0: #{tpu_custom_call.1}
  #allocation0 [shape = 'u32[]', space=smem, size = 0x4, offset = 0x4, fixed_abs, tag = 'smem constant byte address 0x4 - core index']
  #allocation1 [shape = 'u32[144,128]{1,0:T(1,128)}', space=vmem, size = 0x12000, scoped, tag = 'internal scratch']
  #allocation2 [shape = 'f32[8,512]{1,0:T(8,128)}', space=vmem, size = 0x4000, scoped, tag = 'scratch operand']
  #allocation3 [shape = 'f32[8,512]{1,0:T(8,128)}', space=vmem, size = 0x4000, scoped, tag = 'scratch operand']
  %s0 = inlined_call_operand.hbm [shape: f32[8,512], index: 0, kind: input, shape index: {}]
  %s1 = inlined_call_operand.hbm [shape: f32[1,1], index: 1, kind: output, shape index: {0}]
  %s2 = inlined_call_operand.hbm [shape: f32[1,1], index: 2, kind: output, shape index: {1}]
  %3 = xla_tuple %s1, %s2
  %s4 = sld [smem:[#allocation0]]
  $region34: #{tpu_custom_call.1} parent=0
    _
  %s6 = ssub.s32 1, %s4
  %s7 = scalar_select 0, %s6, %s4
  $region1: #{tpu_custom_call.1} parent=0
    #allocation4 [shape = 'u8[16384]{0}', space=vmem, size = 0x4000, scoped, tag = 'input window, operand 0, single buffered']
    #allocation5 [shape = 's32[1]{0}', space=sflag, size = 0x4, scoped, tag = 'scoped memory for tpu_custom_call.1']
    #allocation6 [shape = 's32[1]{0}', space=sflag, size = 0x4, scoped, tag = 'scoped memory for tpu_custom_call.1']
    #allocation7 [shape = 'u8[512]{0}', space=smem, size = 0x200, scoped, tag = 'output window, operand 0, single buffered']
    #allocation8 [shape = 'u8[512]{0}', space=smem, size = 0x200, scoped, tag = 'output window, operand 1, single buffered']
    #allocation9 [shape = 's32[1]{0}', space=sflag, size = 0x4, scoped, tag = 'scoped memory for tpu_custom_call.1']
    %8 = vsyncpa [#allocation5], 0
    %9 = vsyncpa [#allocation6], 0
    %10 = vsyncpa [#allocation9], 0
    // Predicated region
    $region2: #{tpu_custom_call.1} parent=1 // pred_check
      _
    $region3: #{tpu_custom_call.1} parent=1 // pred_check_branch
      %12 = sbr.rel (0) target = $region5
    $region4: #{tpu_custom_call.1} parent=1 // pred_region
      %s14 = ssub.s32 512, 512
      %15 = vsyncadd [#allocation5], %s14
      %s17 = sshll.u32 [#allocation4], 4
      %s18 = int_to_ptr.vmem [resolvable:$true] %s17
      %20 = dma.hbm_to_vmem [thread:$0]  %s0, 512, %s18, [#allocation5]
    $region5: #{tpu_custom_call.1} parent=1 // pred_fallthru
      _
    // Predicated region
    $region6: #{tpu_custom_call.1} parent=1 // pred_check
      _
    $region7: #{tpu_custom_call.1} parent=1 // pred_check_branch
      %22 = sbr.rel (0) target = $region9
    $region8: #{tpu_custom_call.1} parent=1 // pred_region
      %23 = dma.done [#allocation5], 512
    $region9: #{tpu_custom_call.1} parent=1 // pred_fallthru
      _
    %p24 = scmp.eq.s32.totalorder 0, 0
    // Predicated region
    $region10: #{tpu_custom_call.1} parent=1 // pred_check
      %p25 = pneg %p24
    $region11: #{tpu_custom_call.1} parent=1 // pred_check_branch
      %27 = sbr.rel (%p25) target = $region13
    $region12: #{tpu_custom_call.1} parent=1 // pred_region
      %28 = vst [vmem:[#allocation2] sm:$0xff] 0.0
      %29 = vst [vmem:[#allocation2 + $0x8] sm:$0xff] 0.0
      %30 = vst [vmem:[#allocation2 + $0x10] sm:$0xff] 0.0
      %31 = vst [vmem:[#allocation2 + $0x18] sm:$0xff] 0.0
      %32 = vst [vmem:[#allocation3] sm:$0xff] 0.0
      %33 = vst [vmem:[#allocation3 + $0x8] sm:$0xff] 0.0
      %34 = vst [vmem:[#allocation3 + $0x10] sm:$0xff] 0.0
      %35 = vst [vmem:[#allocation3 + $0x18] sm:$0xff] 0.0
    $region13: #{tpu_custom_call.1} parent=1 // pred_fallthru
      _
    %v36 = vld [vmem:[#allocation4] sm:$0xff]
    %v37 = vld [vmem:[#allocation4 + $0x8] sm:$0xff]
    %v38 = vld [vmem:[#allocation4 + $0x10] sm:$0xff]
    %v39 = vld [vmem:[#allocation4 + $0x18] sm:$0xff]
    %v40 = vld [vmem:[#allocation2] sm:$0xff]
    %v41 = vld [vmem:[#allocation2 + $0x8] sm:$0xff]
    %v42 = vld [vmem:[#allocation2 + $0x10] sm:$0xff]
    %v43 = vld [vmem:[#allocation2 + $0x18] sm:$0xff]
    %v44 = vadd.f32 %v36, 0.0
    %v45 = vadd.f32 %v37, 0.0
    %v46 = vadd.f32 %v38, 0.0
    %v47 = vadd.f32 %v39, 0.0
    %v48 = vadd.f32 %v40, %v44
    %v49 = vadd.f32 %v41, %v45
    %v50 = vadd.f32 %v42, %v46
    %v51 = vadd.f32 %v43, %v47
    %52 = vst [vmem:[#allocation2] sm:$0xff] %v48
    %53 = vst [vmem:[#allocation2 + $0x8] sm:$0xff] %v49
    %54 = vst [vmem:[#allocation2 + $0x10] sm:$0xff] %v50
    %55 = vst [vmem:[#allocation2 + $0x18] sm:$0xff] %v51
    %v56 = vld [vmem:[#allocation3] sm:$0xff]
    %v57 = vld [vmem:[#allocation3 + $0x8] sm:$0xff]
    %v58 = vld [vmem:[#allocation3 + $0x10] sm:$0xff]
    %v59 = vld [vmem:[#allocation3 + $0x18] sm:$0xff]
    %v60 = vmul.f32 %v36, %v36
    %v61 = vmul.f32 %v37, %v37
    %v62 = vmul.f32 %v38, %v38
    %v63 = vmul.f32 %v39, %v39
    %v64 = vadd.f32 %v60, 0.0
    %v65 = vadd.f32 %v61, 0.0
    %v66 = vadd.f32 %v62, 0.0
    %v67 = vadd.f32 %v63, 0.0
    %v68 = vadd.f32 %v56, %v64
    %v69 = vadd.f32 %v57, %v65
    %v70 = vadd.f32 %v58, %v66
    %v71 = vadd.f32 %v59, %v67
    %72 = vst [vmem:[#allocation3] sm:$0xff] %v68
    %73 = vst [vmem:[#allocation3 + $0x8] sm:$0xff] %v69
    %74 = vst [vmem:[#allocation3 + $0x10] sm:$0xff] %v70
    %75 = vst [vmem:[#allocation3 + $0x18] sm:$0xff] %v71
    // Predicated region
    $region14: #{tpu_custom_call.1} parent=1 // pred_check
      %p76 = pneg %p24
    $region15: #{tpu_custom_call.1} parent=1 // pred_check_branch
      %78 = sbr.rel (%p76) target = $region17
    $region16: #{tpu_custom_call.1} parent=1 // pred_region
      %v79 = vld [vmem:[#allocation2] sm:$0xff]
      %v80 = vld [vmem:[#allocation2 + $0x8] sm:$0xff]
      %v81 = vld [vmem:[#allocation2 + $0x10] sm:$0xff]
      %v82 = vld [vmem:[#allocation2 + $0x18] sm:$0xff]
      %v83 = vadd.f32 %v79, %v80
      %v84 = vadd.f32 %v83, %v81
      %v85 = vadd.f32 %v84, %v82
      %86 = vadd.xlane.f32.xlu0 %v85
      %v87 = vpop.xlane.xlu0 %86
      %v88 = vrot.slane %v87, 4
      %v89 = vadd.f32 %v87, %v88
      %v90 = vrot.slane %v89, 2
      %v91 = vadd.f32 %v89, %v90
      %v92 = vrot.slane %v91, 1
      %v93 = vadd.f32 %v91, %v92
      %s94 = vtos %v93
      %s95 = scalar_lea.smem [#allocation7], 0
      %96 = sst [smem:[%s95]] %s94
      %v97 = vld [vmem:[#allocation3] sm:$0xff]
      %v98 = vld [vmem:[#allocation3 + $0x8] sm:$0xff]
      %v99 = vld [vmem:[#allocation3 + $0x10] sm:$0xff]
      %v100 = vld [vmem:[#allocation3 + $0x18] sm:$0xff]
      %v101 = vadd.f32 %v97, %v98
      %v102 = vadd.f32 %v101, %v99
      %v103 = vadd.f32 %v102, %v100
      %104 = vadd.xlane.f32.xlu0 %v103
      %v105 = vpop.xlane.xlu0 %104
      %v106 = vrot.slane %v105, 4
      %v107 = vadd.f32 %v105, %v106
      %v108 = vrot.slane %v107, 2
      %v109 = vadd.f32 %v107, %v108
      %v110 = vrot.slane %v109, 1
      %v111 = vadd.f32 %v109, %v110
      %s112 = vtos %v111
      %s113 = scalar_lea.smem [#allocation8], 0
      %114 = sst [smem:[%s113]] %s112
    $region17: #{tpu_custom_call.1} parent=1 // pred_fallthru
      _
    // Predicated region
    $region18: #{tpu_custom_call.1} parent=1 // pred_check
      _
    $region19: #{tpu_custom_call.1} parent=1 // pred_check_branch
      %116 = sbr.rel (0) target = $region21
    $region20: #{tpu_custom_call.1} parent=1 // pred_region
      %s118 = ssub.s32 16, 16
      %119 = vsyncadd [#allocation6], %s118
      %122 = dma.smem_to_hbm [#allocation7], 16, %s1, [#allocation6]
    $region21: #{tpu_custom_call.1} parent=1 // pred_fallthru
      _
    // Predicated region
    $region22: #{tpu_custom_call.1} parent=1 // pred_check
      _
    $region23: #{tpu_custom_call.1} parent=1 // pred_check_branch
      %124 = sbr.rel (0) target = $region25
    $region24: #{tpu_custom_call.1} parent=1 // pred_region
      %s126 = ssub.s32 16, 16
      %127 = vsyncadd [#allocation9], %s126
      %130 = dma.smem_to_hbm [#allocation8], 16, %s2, [#allocation9]
    $region25: #{tpu_custom_call.1} parent=1 // pred_fallthru
      _
    // Predicated region
    $region26: #{tpu_custom_call.1} parent=1 // pred_check
      _
    $region27: #{tpu_custom_call.1} parent=1 // pred_check_branch
      %132 = sbr.rel (0) target = $region29
    $region28: #{tpu_custom_call.1} parent=1 // pred_region
      %133 = dma.done [#allocation6], 16
    $region29: #{tpu_custom_call.1} parent=1 // pred_fallthru
      _
    // Predicated region
    $region30: #{tpu_custom_call.1} parent=1 // pred_check
      _
    $region31: #{tpu_custom_call.1} parent=1 // pred_check_branch
      %135 = sbr.rel (0) target = $region33
    $region32: #{tpu_custom_call.1} parent=1 // pred_region
      %136 = dma.done [#allocation9], 16
    $region33: #{tpu_custom_call.1} parent=1 // pred_fallthru
      _
    %137 = sfence
    %138 = vsyncpa [#allocation5], 1
    %139 = vsyncpa [#allocation6], 1
    %140 = vsyncpa [#allocation9], 1

</llo_original>
